<compile_context>
chip_gen: v7x
topology: tpu7x:2x2x1
jax: 0.10.0
libtpu: 0.0.40
codegen_flags: <defaults>
</compile_context>

<pallas_src>
import functools

import jax
import jax.numpy as jnp
from jax.experimental import pallas as pl
from jax.experimental.pallas import tpu as pltpu

_LANE = 128
_SUB = 8            # f32 vreg sublane count; accumulator tile rows
_ROW_QUANT = 32     # tile_r multiple: covers f32(8)/bf16(16)/int8(32) sublane quanta
_NUM_CORES = 2      # leading "parallel" grid axis (both TCs on v7x; harmless on 1-TC chips)


def _cdiv(a, b):
    return -(-a // b)


def _round_up(x, m):
    return (x + m - 1) // m * m


def _vmem_capacity_bytes():
    try:
        return int(pltpu.get_tpu_info().vmem_capacity_bytes)
    except Exception:  # CPU tracing / older jax: assume the smaller (v7x) VMEM
        return 64 << 20


def _dice_bce_partials_kernel(x_ref, t_ref, o_ref, acc_ref, *, binary_targets):
    i = pl.program_id(1)

    @pl.when(i == 0)
    def _init():
        acc_ref[...] = jnp.zeros_like(acc_ref)

    xf = x_ref[...].astype(jnp.float32)          # (B, tile_r, 128)
    tf = t_ref[...].astype(jnp.float32)
    b, tr, lanes = xf.shape
    g = tr // _SUB
    # Vreg-aligned regrouping of the sublane axis (tile_r -> g x 8): the
    # jnp.sum(..., axis=1) below is then pure VALU vreg adds, no per-step
    # cross-lane/sublane (XLU) reductions and no narrow masked stores.
    x = xf.reshape(b, g, _SUB, lanes)
    t = tf.reshape(b, g, _SUB, lanes)

    acc_ref[0] += jnp.sum(x * t, axis=1)         # Dice: sum x*t   (per batch)
    acc_ref[1] += jnp.sum(x * x, axis=1)         # Dice: sum x*x   (per batch)

    if binary_targets:
        # Hard {0,1} masks: t*t == t, and -log(1 - |x - t|) is the per-element
        # BCE for both classes (single log / element, clamp matches PyTorch's
        # -100 log clamp). Zero-padded columns contribute exactly 0 everywhere.
        nl = jnp.minimum(-jnp.log(1.0 - jnp.abs(x - t)), 100.0)
        acc_ref[2] += jnp.sum(t, axis=1)          # sum t == sum t*t == pos count
        acc_ref[3] += jnp.sum(t * nl, axis=1)     # positive-class BCE sum
        acc_ref[4] += jnp.sum(nl, axis=1)         # total BCE sum (neg = total - pos)
    else:
        # General soft-label path: exact two-log BCE. Padded x=t=0 columns add
        # 0 to every loss sum; their spurious `neg` count is a compile-time
        # constant removed in the wrapper, so no per-tile mask is needed.
        log_x = jnp.maximum(jnp.log(x), -100.0)
        log_1mx = jnp.maximum(jnp.log(1.0 - x), -100.0)
        bce = -(t * log_x + (1.0 - t) * log_1mx)
        pos = (t > 0.5).astype(jnp.float32)
        neg = (t < 0.5).astype(jnp.float32)
        acc_ref[2] += jnp.sum(t * t, axis=1)
        acc_ref[3] += jnp.sum(pos * bce, axis=1)
        acc_ref[4] += jnp.sum(neg * bce, axis=1)
        acc_ref[5] += jnp.sum(pos, axis=1)
        acc_ref[6] += jnp.sum(neg, axis=1)

    @pl.when(i == pl.num_programs(1) - 1)
    def _flush():
        o_ref[...] = acc_ref[...]


def weighted_dice_bce(inputs, targets, *, dice_weight=1.0, bce_weight=1.0,
                      binary_targets=True, tile_rows=None):
    """WeightedDiceBCE forward (n_labels=1).

    inputs: probabilities in (0,1), NCHW (any shape/dtype: f32 or bf16);
    targets: same shape (f32 / bf16 / uint8). binary_targets=True assumes hard
    0/1 masks (single-log fast path); pass False for soft labels.
    Note: accumulation is f32; for extremely large B*N the counts/sums lose
    exactness vs. a float64 reference (loss-level error stays tiny).
    """
    assert inputs.shape == targets.shape
    b = inputs.shape[0]
    x = inputs.reshape(b, -1)          # native dtype: no extra HBM copies here
    t = targets.reshape(b, -1)
    n = x.shape[1]
    isx = x.dtype.itemsize
    ist = t.dtype.itemsize

    rows = _cdiv(n, _LANE)             # real 128-lane rows per batch sample

    # ---- per-generation block budget (total for 2 inputs x 2 buffers) ------
    vmem_cap = _vmem_capacity_bytes()
    big_vmem = vmem_cap >= (100 << 20)            # v5e/v6e (128 MiB) vs v7x (64 MiB)
    block_budget = (16 << 20) if big_vmem else (8 << 20)

    if tile_rows is None:
        tile_r = block_budget // (2 * b * _LANE * (isx + ist))
    else:
        tile_r = int(tile_rows)
    need = _round_up(_cdiv(rows, _NUM_CORES), _ROW_QUANT)
    tile_r = max(_ROW_QUANT, min((tile_r // _ROW_QUANT) * _ROW_QUANT, need))

    steps = _cdiv(rows, _NUM_CORES * tile_r)
    rows_pad = _NUM_CORES * steps * tile_r
    n_pad = rows_pad * _LANE
    if n_pad != n:
        # Zero padding is neutral for every accumulated sum (see kernel notes).
        x = jnp.pad(x, ((0, 0), (0, n_pad - n)))
        t = jnp.pad(t, ((0, 0), (0, n_pad - n)))
    x = x.reshape(b, rows_pad, _LANE)
    t = t.reshape(b, rows_pad, _LANE)

    nq = 5 if binary_targets else 7
    kernel = functools.partial(_dice_bce_partials_kernel,
                               binary_targets=bool(binary_targets))
    grid = (_NUM_CORES, steps)

    # ---- VMEM accounting from the dense padded layout ----------------------
    block_x = b * tile_r * _LANE * isx
    block_t = b * tile_r * _LANE * ist
    block_f32 = b * tile_r * _LANE * 4
    acc_bytes = nq * b * _SUB * _LANE * 4
    out_bytes = _NUM_CORES * acc_bytes
    vmem_limit = (2 * (block_x + block_t)     # double-buffered input blocks
                  + 6 * block_f32             # headroom for f32 casts / temporaries
                  + acc_bytes + out_bytes + (2 << 20))
    vmem_clamp = (96 << 20) if big_vmem else (44 << 20)
    vmem_limit = int(max(24 << 20, min(vmem_limit, vmem_clamp)))

    total_elems = b * n_pad
    cost = pl.CostEstimate(
        flops=12 * total_elems,
        transcendentals=(1 if binary_targets else 2) * total_elems,
        bytes_accessed=total_elems * (isx + ist) + out_bytes,
    )

    partials = pl.pallas_call(
        kernel,
        out_shape=jax.ShapeDtypeStruct((_NUM_CORES * nq, b, _SUB, _LANE), jnp.float32),
        grid_spec=pltpu.PrefetchScalarGridSpec(
            num_scalar_prefetch=0,
            grid=grid,
            in_specs=[
                pl.BlockSpec((b, tile_r, _LANE), lambda c, i: (0, c * steps + i, 0)),
                pl.BlockSpec((b, tile_r, _LANE), lambda c, i: (0, c * steps + i, 0)),
            ],
            out_specs=pl.BlockSpec((nq, b, _SUB, _LANE), lambda c, i: (c, 0, 0, 0)),
            scratch_shapes=[pltpu.VMEM((nq, b, _SUB, _LANE), jnp.float32)],
        ),
        compiler_params=pltpu.CompilerParams(
            dimension_semantics=("parallel", "arbitrary"),
            vmem_limit_bytes=vmem_limit,
        ),
        cost_estimate=cost,
    )(x, t)

    # ---- tiny final combine (few hundred flops) in plain JAX ----------------
    sums = partials.reshape(_NUM_CORES, nq, b, _SUB * _LANE).sum(axis=(0, 3))  # (nq, b)
    s_xt, s_xx, s_tt = sums[0], sums[1], sums[2]

    smooth = 1e-5
    dice_cw = 0.5                 # WeightedDiceLoss(weights=[0.5, 0.5]) -> constant w
    bce_cw = (0.5, 0.5)           # WeightedBCE(weights=[0.5, 0.5])

    c2 = dice_cw * dice_cw        # w*p, w*t with w == 0.5 folds to a 0.25 factor
    inter = c2 * s_xt
    union = c2 * (s_xx + s_tt)
    dice_loss = jnp.mean(1.0 - (2.0 * inter + smooth) / (union + smooth))

    if binary_targets:
        lp = jnp.sum(sums[3])
        lt = jnp.sum(sums[4])
        pos_cnt = jnp.sum(s_tt)                 # t*t == t for hard masks
        neg_cnt = float(b * n) - pos_cnt        # padded zeros never counted
        ln = lt - lp
    else:
        lp = jnp.sum(sums[3])
        ln = jnp.sum(sums[4])
        pos_cnt = jnp.sum(sums[5])
        neg_cnt = jnp.sum(sums[6]) - float(b * (n_pad - n))   # remove zero padding
    bce_loss = (bce_cw[0] * lp / (pos_cnt + 1e-12) +
                bce_cw[1] * ln / (neg_cnt + 1e-12))

    return dice_weight * dice_loss + bce_weight * bce_loss


def _reference(inputs, targets, dice_weight=1.0, bce_weight=1.0):
    """Pure-JAX reference mirroring the PyTorch module exactly."""
    b = inputs.shape[0]
    x = inputs.reshape(b, -1).astype(jnp.float32)
    t = targets.reshape(b, -1).astype(jnp.float32)
    # WeightedDiceLoss (weights=[0.5, 0.5])
    w = t * (0.5 - 0.5) + 0.5
    p = w * x
    tt = w * t
    inter = (p * tt).sum(-1)
    union = (p * p).sum(-1) + (tt * tt).sum(-1)
    dice = (1.0 - (2.0 * inter + 1e-5) / (union + 1e-5)).mean()
    # WeightedBCE (weights=[0.5, 0.5])
    xf = x.reshape(-1)
    tf = t.reshape(-1)
    bce_elem = -(tf * jnp.maximum(jnp.log(xf), -100.0) +
                 (1.0 - tf) * jnp.maximum(jnp.log(1.0 - xf), -100.0))
    pos = (tf > 0.5).astype(jnp.float32)
    neg = (tf < 0.5).astype(jnp.float32)
    pos_w = pos.sum() + 1e-12
    neg_w = neg.sum() + 1e-12
    bce = (0.5 * pos * bce_elem / pos_w + 0.5 * neg * bce_elem / neg_w).sum()
    return dice_weight * dice + bce_weight * bce


if __name__ == "__main__":
    key = jax.random.PRNGKey(0)
    ks = jax.random.split(key, 8)

    # 1) Primary small-shape check (n_labels=1: probabilities + binary mask).
    B, C, H, W = 2, 1, 16, 16
    inp = jax.nn.sigmoid(jax.random.normal(ks[0], (B, C, H, W), jnp.float32))
    tgt = (jax.random.uniform(ks[1], (B, C, H, W)) > 0.5).astype(jnp.float32)
    got = jax.block_until_ready(weighted_dice_bce(inp, tgt))
    ref = _reference(inp, tgt)
    assert jnp.allclose(got, ref, rtol=1e-5, atol=1e-5), (got, ref)

    # 2) Ragged pixel count (N=1200 -> zero-padded rows), both BCE paths.
    inp2 = jax.nn.sigmoid(jax.random.normal(ks[2], (2, 3, 20, 20), jnp.float32))
    tgt2 = (jax.random.uniform(ks[3], (2, 3, 20, 20)) > 0.5).astype(jnp.float32)
    ref2 = _reference(inp2, tgt2)
    for binary in (True, False):
        got2 = jax.block_until_ready(
            weighted_dice_bce(inp2, tgt2, binary_targets=binary))
        assert jnp.allclose(got2, ref2, rtol=1e-5, atol=1e-5), (binary, got2, ref2)

    # 3) Multi-step reduction grid (exercises pipelined accumulation): N=16384.
    inp3 = jax.nn.sigmoid(jax.random.normal(ks[4], (2, 4, 64, 64), jnp.float32))
    tgt3 = (jax.random.uniform(ks[5], (2, 4, 64, 64)) > 0.5).astype(jnp.float32)
    ref3 = _reference(inp3, tgt3)
    got3 = jax.block_until_ready(weighted_dice_bce(inp3, tgt3, tile_rows=32))
    assert jnp.allclose(got3, ref3, rtol=1e-5, atol=1e-5), (got3, ref3)

    # 4) Soft (continuous) labels through the exact two-log path.
    tgt4 = jax.random.uniform(ks[6], (2, 3, 20, 20), jnp.float32)
    ref4 = _reference(inp2, tgt4)
    got4 = jax.block_until_ready(
        weighted_dice_bce(inp2, tgt4, binary_targets=False))
    assert jnp.allclose(got4, ref4, rtol=1e-5, atol=1e-5), (got4, ref4)

    # 5) Narrow HBM dtype (bf16 predictions + bf16 mask), binary fast path.
    inp5 = inp3.astype(jnp.bfloat16)
    tgt5 = tgt3.astype(jnp.bfloat16)
    ref5 = _reference(inp5, tgt5)
    got5 = jax.block_until_ready(weighted_dice_bce(inp5, tgt5))
    assert jnp.allclose(got5, ref5, rtol=1e-4, atol=1e-5), (got5, ref5)

    print("KERNEL_OK")
</pallas_src>

<mosaic_0001>
module attributes {stable_mosaic.version = 11 : i64} {
  func.func @_dice_bce_partials_kernel(%arg0: i32, %arg1: i32, %arg2: memref<2x32x128xf32, #tpu.memory_space<vmem>>, %arg3: memref<2x32x128xf32, #tpu.memory_space<vmem>>, %arg4: memref<5x2x8x128xf32, #tpu.memory_space<vmem>>, %arg5: memref<5x2x8x128xf32, #tpu.memory_space<vmem>>) attributes {dimension_semantics = [#tpu.dimension_semantics<parallel>, #tpu.dimension_semantics<arbitrary>], iteration_bounds = array<i64: 2, 1>, scalar_prefetch = 0 : i64, scratch_operands = 1 : i64, tpu.core_type = #tpu.core_type<tc>, window_params = [{transform_indices = @transform_0, window_bounds = array<i64: 2, 32, 128>}, {transform_indices = @transform_1, window_bounds = array<i64: 2, 32, 128>}, {transform_indices = @transform_2, window_bounds = array<i64: 5, 2, 8, 128>}]} {
    %c0_i32 = arith.constant 0 : i32
    %0 = arith.cmpi eq, %arg1, %c0_i32 : i32
    %1 = arith.extui %0 : i1 to i32
    %c0_i32_0 = arith.constant 0 : i32
    %2 = arith.cmpi ne, %1, %c0_i32_0 : i32
    scf.if %2 {
      %cst_51 = arith.constant 0.000000e+00 : f32
      %57 = vector.broadcast %cst_51 : f32 to vector<5x2x8x128xf32>
      %c0_52 = arith.constant 0 : index
      %c0_53 = arith.constant 0 : index
      %c0_54 = arith.constant 0 : index
      %c0_55 = arith.constant 0 : index
      %58 = vector.load %arg5[%c0_52, %c0_53, %c0_54, %c0_55] : memref<5x2x8x128xf32, #tpu.memory_space<vmem>>, vector<5x2x8x128xf32>
      tpu.vector_store %arg5[%c0_52, %c0_53, %c0_54, %c0_55], %57 {strides = array<i32>} : memref<5x2x8x128xf32, #tpu.memory_space<vmem>>, vector<5x2x8x128xf32>,
    } else {
    }
    %c0 = arith.constant 0 : index
    %c0_1 = arith.constant 0 : index
    %c0_2 = arith.constant 0 : index
    %3 = vector.load %arg2[%c0, %c0_1, %c0_2] : memref<2x32x128xf32, #tpu.memory_space<vmem>>, vector<2x32x128xf32>
    %c0_3 = arith.constant 0 : index
    %c0_4 = arith.constant 0 : index
    %c0_5 = arith.constant 0 : index
    %4 = vector.load %arg3[%c0_3, %c0_4, %c0_5] : memref<2x32x128xf32, #tpu.memory_space<vmem>>, vector<2x32x128xf32>
    %5 = vector.shape_cast %3 : vector<2x32x128xf32> to vector<2x4x8x128xf32>
    %6 = vector.shape_cast %4 : vector<2x32x128xf32> to vector<2x4x8x128xf32>
    %c0_6 = arith.constant 0 : index
    %c0_7 = arith.constant 0 : index
    %c0_8 = arith.constant 0 : index
    %c0_9 = arith.constant 0 : index
    %7 = vector.load %arg5[%c0_6, %c0_7, %c0_8, %c0_9] : memref<5x2x8x128xf32, #tpu.memory_space<vmem>>, vector<1x2x8x128xf32>
    %8 = vector.shape_cast %7 : vector<1x2x8x128xf32> to vector<2x8x128xf32>
    %9 = arith.mulf %5, %6 : vector<2x4x8x128xf32>
    %cst = arith.constant dense<0.000000e+00> : vector<2x8x128xf32>
    %10 = vector.multi_reduction <add>, %9, %cst [1] : vector<2x4x8x128xf32> to vector<2x8x128xf32>
    %11 = arith.addf %8, %10 : vector<2x8x128xf32>
    %c0_10 = arith.constant 0 : index
    %c0_11 = arith.constant 0 : index
    %c0_12 = arith.constant 0 : index
    %c0_13 = arith.constant 0 : index
    %12 = vector.load %arg5[%c0_10, %c0_11, %c0_12, %c0_13] : memref<5x2x8x128xf32, #tpu.memory_space<vmem>>, vector<1x2x8x128xf32>
    %13 = vector.shape_cast %12 : vector<1x2x8x128xf32> to vector<2x8x128xf32>
    %14 = vector.shape_cast %11 : vector<2x8x128xf32> to vector<1x2x8x128xf32>
    tpu.vector_store %arg5[%c0_10, %c0_11, %c0_12, %c0_13], %14 {strides = array<i32>} : memref<5x2x8x128xf32, #tpu.memory_space<vmem>>, vector<1x2x8x128xf32>,
    %c1 = arith.constant 1 : index
    %c0_14 = arith.constant 0 : index
    %c0_15 = arith.constant 0 : index
    %c0_16 = arith.constant 0 : index
    %15 = vector.load %arg5[%c1, %c0_14, %c0_15, %c0_16] : memref<5x2x8x128xf32, #tpu.memory_space<vmem>>, vector<1x2x8x128xf32>
    %16 = vector.shape_cast %15 : vector<1x2x8x128xf32> to vector<2x8x128xf32>
    %17 = arith.mulf %5, %5 : vector<2x4x8x128xf32>
    %cst_17 = arith.constant dense<0.000000e+00> : vector<2x8x128xf32>
    %18 = vector.multi_reduction <add>, %17, %cst_17 [1] : vector<2x4x8x128xf32> to vector<2x8x128xf32>
    %19 = arith.addf %16, %18 : vector<2x8x128xf32>
    %c1_18 = arith.constant 1 : index
    %c0_19 = arith.constant 0 : index
    %c0_20 = arith.constant 0 : index
    %c0_21 = arith.constant 0 : index
    %20 = vector.load %arg5[%c1_18, %c0_19, %c0_20, %c0_21] : memref<5x2x8x128xf32, #tpu.memory_space<vmem>>, vector<1x2x8x128xf32>
    %21 = vector.shape_cast %20 : vector<1x2x8x128xf32> to vector<2x8x128xf32>
    %22 = vector.shape_cast %19 : vector<2x8x128xf32> to vector<1x2x8x128xf32>
    tpu.vector_store %arg5[%c1_18, %c0_19, %c0_20, %c0_21], %22 {strides = array<i32>} : memref<5x2x8x128xf32, #tpu.memory_space<vmem>>, vector<1x2x8x128xf32>,
    %23 = arith.subf %5, %6 : vector<2x4x8x128xf32>
    %24 = math.absf %23 : vector<2x4x8x128xf32>
    %cst_22 = arith.constant 1.000000e+00 : f32
    %25 = vector.broadcast %cst_22 : f32 to vector<2x4x8x128xf32>
    %26 = arith.subf %25, %24 : vector<2x4x8x128xf32>
    %27 = math.log %26 : vector<2x4x8x128xf32>
    %cst_23 = arith.constant 0.000000e+00 : f32
    %28 = vector.broadcast %cst_23 : f32 to vector<2x4x8x128xf32>
    %29 = arith.subf %28, %27 : vector<2x4x8x128xf32>
    %cst_24 = arith.constant 1.000000e+02 : f32
    %30 = vector.broadcast %cst_24 : f32 to vector<2x4x8x128xf32>
    %31 = arith.minimumf %29, %30 : vector<2x4x8x128xf32>
    %c2 = arith.constant 2 : index
    %c0_25 = arith.constant 0 : index
    %c0_26 = arith.constant 0 : index
    %c0_27 = arith.constant 0 : index
    %32 = vector.load %arg5[%c2, %c0_25, %c0_26, %c0_27] : memref<5x2x8x128xf32, #tpu.memory_space<vmem>>, vector<1x2x8x128xf32>
    %33 = vector.shape_cast %32 : vector<1x2x8x128xf32> to vector<2x8x128xf32>
    %cst_28 = arith.constant dense<0.000000e+00> : vector<2x8x128xf32>
    %34 = vector.multi_reduction <add>, %6, %cst_28 [1] : vector<2x4x8x128xf32> to vector<2x8x128xf32>
    %35 = arith.addf %33, %34 : vector<2x8x128xf32>
    %c2_29 = arith.constant 2 : index
    %c0_30 = arith.constant 0 : index
    %c0_31 = arith.constant 0 : index
    %c0_32 = arith.constant 0 : index
    %36 = vector.load %arg5[%c2_29, %c0_30, %c0_31, %c0_32] : memref<5x2x8x128xf32, #tpu.memory_space<vmem>>, vector<1x2x8x128xf32>
    %37 = vector.shape_cast %36 : vector<1x2x8x128xf32> to vector<2x8x128xf32>
    %38 = vector.shape_cast %35 : vector<2x8x128xf32> to vector<1x2x8x128xf32>
    tpu.vector_store %arg5[%c2_29, %c0_30, %c0_31, %c0_32], %38 {strides = array<i32>} : memref<5x2x8x128xf32, #tpu.memory_space<vmem>>, vector<1x2x8x128xf32>,
    %c3 = arith.constant 3 : index
    %c0_33 = arith.constant 0 : index
    %c0_34 = arith.constant 0 : index
    %c0_35 = arith.constant 0 : index
    %39 = vector.load %arg5[%c3, %c0_33, %c0_34, %c0_35] : memref<5x2x8x128xf32, #tpu.memory_space<vmem>>, vector<1x2x8x128xf32>
    %40 = vector.shape_cast %39 : vector<1x2x8x128xf32> to vector<2x8x128xf32>
    %41 = arith.mulf %6, %31 : vector<2x4x8x128xf32>
    %cst_36 = arith.constant dense<0.000000e+00> : vector<2x8x128xf32>
    %42 = vector.multi_reduction <add>, %41, %cst_36 [1] : vector<2x4x8x128xf32> to vector<2x8x128xf32>
    %43 = arith.addf %40, %42 : vector<2x8x128xf32>
    %c3_37 = arith.constant 3 : index
    %c0_38 = arith.constant 0 : index
    %c0_39 = arith.constant 0 : index
    %c0_40 = arith.constant 0 : index
    %44 = vector.load %arg5[%c3_37, %c0_38, %c0_39, %c0_40] : memref<5x2x8x128xf32, #tpu.memory_space<vmem>>, vector<1x2x8x128xf32>
    %45 = vector.shape_cast %44 : vector<1x2x8x128xf32> to vector<2x8x128xf32>
    %46 = vector.shape_cast %43 : vector<2x8x128xf32> to vector<1x2x8x128xf32>
    tpu.vector_store %arg5[%c3_37, %c0_38, %c0_39, %c0_40], %46 {strides = array<i32>} : memref<5x2x8x128xf32, #tpu.memory_space<vmem>>, vector<1x2x8x128xf32>,
    %c4 = arith.constant 4 : index
    %c0_41 = arith.constant 0 : index
    %c0_42 = arith.constant 0 : index
    %c0_43 = arith.constant 0 : index
    %47 = vector.load %arg5[%c4, %c0_41, %c0_42, %c0_43] : memref<5x2x8x128xf32, #tpu.memory_space<vmem>>, vector<1x2x8x128xf32>
    %48 = vector.shape_cast %47 : vector<1x2x8x128xf32> to vector<2x8x128xf32>
    %cst_44 = arith.constant dense<0.000000e+00> : vector<2x8x128xf32>
    %49 = vector.multi_reduction <add>, %31, %cst_44 [1] : vector<2x4x8x128xf32> to vector<2x8x128xf32>
    %50 = arith.addf %48, %49 : vector<2x8x128xf32>
    %c4_45 = arith.constant 4 : index
    %c0_46 = arith.constant 0 : index
    %c0_47 = arith.constant 0 : index
    %c0_48 = arith.constant 0 : index
    %51 = vector.load %arg5[%c4_45, %c0_46, %c0_47, %c0_48] : memref<5x2x8x128xf32, #tpu.memory_space<vmem>>, vector<1x2x8x128xf32>
    %52 = vector.shape_cast %51 : vector<1x2x8x128xf32> to vector<2x8x128xf32>
    %53 = vector.shape_cast %50 : vector<2x8x128xf32> to vector<1x2x8x128xf32>
    tpu.vector_store %arg5[%c4_45, %c0_46, %c0_47, %c0_48], %53 {strides = array<i32>} : memref<5x2x8x128xf32, #tpu.memory_space<vmem>>, vector<1x2x8x128xf32>,
    %c0_i32_49 = arith.constant 0 : i32
    %54 = arith.cmpi eq, %arg1, %c0_i32_49 : i32
    %55 = arith.extui %54 : i1 to i32
    %c0_i32_50 = arith.constant 0 : i32
    %56 = arith.cmpi ne, %55, %c0_i32_50 : i32
    scf.if %56 {
      %c0_51 = arith.constant 0 : index
      %c0_52 = arith.constant 0 : index
      %c0_53 = arith.constant 0 : index
      %c0_54 = arith.constant 0 : index
      %57 = vector.load %arg5[%c0_51, %c0_52, %c0_53, %c0_54] : memref<5x2x8x128xf32, #tpu.memory_space<vmem>>, vector<5x2x8x128xf32>
      %c0_55 = arith.constant 0 : index
      %c0_56 = arith.constant 0 : index
      %c0_57 = arith.constant 0 : index
      %c0_58 = arith.constant 0 : index
      %58 = vector.load %arg4[%c0_55, %c0_56, %c0_57, %c0_58] : memref<5x2x8x128xf32, #tpu.memory_space<vmem>>, vector<5x2x8x128xf32>
      tpu.vector_store %arg4[%c0_55, %c0_56, %c0_57, %c0_58], %57 {strides = array<i32>} : memref<5x2x8x128xf32, #tpu.memory_space<vmem>>, vector<5x2x8x128xf32>,
    } else {
    }
    return
  }
  func.func @transform_0(%arg0: i32, %arg1: i32) -> (i32, i32, i32) {
    %c1_i32 = arith.constant 1 : i32
    %0 = arith.muli %arg0, %c1_i32 : i32
    %1 = arith.addi %0, %arg1 : i32
    %c0_i32 = arith.constant 0 : i32
    %c0_i32_0 = arith.constant 0 : i32
    %c0_i32_1 = arith.constant 0 : i32
    return %c0_i32, %1, %c0_i32_0 : i32, i32, i32
  }
  func.func @transform_1(%arg0: i32, %arg1: i32) -> (i32, i32, i32) {
    %c1_i32 = arith.constant 1 : i32
    %0 = arith.muli %arg0, %c1_i32 : i32
    %1 = arith.addi %0, %arg1 : i32
    %c0_i32 = arith.constant 0 : i32
    %c0_i32_0 = arith.constant 0 : i32
    %c0_i32_1 = arith.constant 0 : i32
    return %c0_i32, %1, %c0_i32_0 : i32, i32, i32
  }
  func.func @transform_2(%arg0: i32, %arg1: i32) -> (i32, i32, i32, i32) {
    %c0_i32 = arith.constant 0 : i32
    %c0_i32_0 = arith.constant 0 : i32
    %c0_i32_1 = arith.constant 0 : i32
    %c0_i32_2 = arith.constant 0 : i32
    return %arg0, %c0_i32, %c0_i32_0, %c0_i32_1 : i32, i32, i32, i32
  }
}

</mosaic_0001>

<llo_original>
// kernel: tpu_custom_call.1
$region0: #{tpu_custom_call.1}
  #allocation0 [shape = 'u32[]', space=smem, size = 0x4, offset = 0x4, fixed_abs, tag = 'smem constant byte address 0x4 - core index']
  #allocation1 [shape = 'u32[144,128]{1,0:T(1,128)}', space=vmem, size = 0x12000, scoped, tag = 'internal scratch']
  #allocation2 [shape = 'f32[5,2,8,128]{3,2,1,0:T(8,128)}', space=vmem, size = 0xa000, scoped, tag = 'scratch operand']
  #allocation9 [shape = 's32[]', space=sflag, size = 0x4, offset = 0, fixed_abs, tag = 'sflag constant byte address 0x0 - dummy sync flag']
  #allocation11 [shape = 's32[]', space=sflag, size = 0x4, offset = 0, fixed_abs, tag = 'sflag constant byte address 0x0 - dummy sync flag']
  %s0 = inlined_call_operand.hbm [shape: f32[2,64,128], index: 0, kind: input, shape index: {}]
  %s1 = inlined_call_operand.hbm [shape: f32[2,64,128], index: 1, kind: input, shape index: {}]
  %s2 = inlined_call_operand.hbm [shape: f32[10,2,8,128], index: 2, kind: output, shape index: {}]
  %s3 = sld [smem:[#allocation0]]
  $region57: #{tpu_custom_call.1} parent=0
    _
  %s5 = ssub.s32 1, %s3
  %s6 = scalar_select 0, %s5, %s3
  $region1: #{tpu_custom_call.1} parent=0
    #allocation3 [shape = 'u8[65536]{0}', space=vmem, size = 0x10000, scoped, tag = 'input window, operand 0']
    #allocation4 [shape = 's32[2]{0}', space=sflag, size = 0x8, scoped, tag = 'scoped memory for tpu_custom_call.1']
    #allocation5 [shape = 's32[2]{0}', space=sflag, size = 0x8, scoped, tag = 'scoped memory for tpu_custom_call.1']
    #allocation6 [shape = 'u8[65536]{0}', space=vmem, size = 0x10000, scoped, tag = 'input window, operand 1']
    #allocation7 [shape = 's32[2]{0}', space=sflag, size = 0x8, scoped, tag = 'scoped memory for tpu_custom_call.1']
    #allocation8 [shape = 'u8[81920]{0}', space=vmem, size = 0x14000, scoped, tag = 'output window, operand 0']
    %7 = vsyncpa [#allocation4], 0
    %s8 = scalar_lea.sflag [#allocation4], 1
    %9 = vsyncpa %s8, 0
    %10 = vsyncpa [#allocation7], 0
    %s11 = scalar_lea.sflag [#allocation7], 1
    %12 = vsyncpa %s11, 0
    %13 = vsyncpa [#allocation5], 0
    %s14 = scalar_lea.sflag [#allocation5], 1
    %15 = vsyncpa %s14, 0
    loop: start=0, step=1, limit=4
    $region2: #{tpu_custom_call.1} parent=1 // loop_pre_header
      _
    $region3: #{tpu_custom_call.1} parent=1 // loop_header
      %s17 = sphi 0, %s21
      %p18 = scmp.ge.s32.totalorder %s17, 4
      %s24 = sphi 0, %s36
      %s25 = sphi 0, %s32
      %s26 = sphi 0, %s24
      %s27 = sphi 0, %s25
      %s28 = sphi 0, %s26
      %s29 = sphi 0, %s27
      %s41 = sphi 0, %s43
      %s44 = sphi 0, %s41
      %s45 = sphi 0, %s44
      %s61 = sphi 0, %s45
      %s69 = sphi 0, %s71
      %s72 = sphi 0, %s69
      %s73 = sphi 0, %s72
      %s89 = sphi 0, %s73
      %s95 = sphi 0, %s97
      %s98 = sphi 0, %s95
      %s99 = sphi 0, %s98
      %s115 = sphi 0, %s99
    $region4: #{tpu_custom_call.1} parent=1 // loop_header_branch
      %20 = sbr.rel (%p18) target = $region8
    $region5: #{tpu_custom_call.1} parent=1 // loop_body
      %s22 = ssub.s32 %s17, 1
      %s23 = ssub.s32 %s17, 2
      %s30 = sadd.s32 1, %s25
      %p31 = scmp.ge.s32.totalorder %s30, 1
      %s32 = scalar_select %p31, 0, %s30
      %s33 = sadd.s32 1, %s24
      %s34 = scalar_select %p31, %s33, %s24
      %p35 = scmp.ge.s32.totalorder %s34, 2
      %s36 = scalar_select %p35, 0, %s34
      %s37 = sadd.s32 %s24, %s25
      %s38 = sadd.s32 %s36, %s32
      %s39 = ssub.s32 %s37, %s38
      %p40 = scmp.eq.s32.totalorder %s39, 0
      %s42 = sadd.s32 %s41, 1
      %s43 = scalar_select %p40, %s41, %s42
      %p46 = pneg %p40
      %p47 = scmp.eq.s32.totalorder %s17, 1
      %p48 = por %p46, %p47
      %p49 = scmp.ne.s32.totalorder %s41, %s44
      %p50 = scmp.eq.s32.totalorder %s17, 0
      %p51 = por %p49, %p50
      %p52 = scmp.ne.s32.totalorder %s41, %s44
      %p53 = scmp.eq.s32.totalorder %s22, 1
      %p54 = por %p52, %p53
      %p55 = scmp.ne.s32.totalorder %s44, %s45
      %p56 = scmp.eq.s32.totalorder %s22, 0
      %p57 = por %p55, %p56
      %p58 = scmp.ne.s32.totalorder %s44, %s45
      %p59 = scmp.eq.s32.totalorder %s23, 1
      %p60 = por %p58, %p59
      %p62 = scmp.ne.s32.totalorder %s45, %s61
      %p63 = scmp.eq.s32.totalorder %s23, 0
      %p64 = por %p62, %p63
      %s65 = sadd.s32 %s24, %s25
      %s66 = sadd.s32 %s36, %s32
      %s67 = ssub.s32 %s65, %s66
      %p68 = scmp.eq.s32.totalorder %s67, 0
      %s70 = sadd.s32 %s69, 1
      %s71 = scalar_select %p68, %s69, %s70
      %p74 = pneg %p68
      %p75 = scmp.eq.s32.totalorder %s17, 1
      %p76 = por %p74, %p75
      %p77 = scmp.ne.s32.totalorder %s69, %s72
      %p78 = scmp.eq.s32.totalorder %s17, 0
      %p79 = por %p77, %p78
      %p80 = scmp.ne.s32.totalorder %s69, %s72
      %p81 = scmp.eq.s32.totalorder %s22, 1
      %p82 = por %p80, %p81
      %p83 = scmp.ne.s32.totalorder %s72, %s73
      %p84 = scmp.eq.s32.totalorder %s22, 0
      %p85 = por %p83, %p84
      %p86 = scmp.ne.s32.totalorder %s72, %s73
      %p87 = scmp.eq.s32.totalorder %s23, 1
      %p88 = por %p86, %p87
      %p90 = scmp.ne.s32.totalorder %s73, %s89
      %p91 = scmp.eq.s32.totalorder %s23, 0
      %p92 = por %p90, %p91
      %s93 = ssub.s32 %s24, %s36
      %p94 = scmp.eq.s32.totalorder %s93, 0
      %s96 = sadd.s32 %s95, 1
      %s97 = scalar_select %p94, %s95, %s96
      %p100 = pneg %p94
      %p101 = scmp.eq.s32.totalorder %s17, 1
      %p102 = por %p100, %p101
      %p103 = scmp.ne.s32.totalorder %s95, %s98
      %p104 = scmp.eq.s32.totalorder %s17, 0
      %p105 = por %p103, %p104
      %p106 = scmp.ne.s32.totalorder %s95, %s98
      %p107 = scmp.eq.s32.totalorder %s22, 1
      %p108 = por %p106, %p107
      %p109 = scmp.ne.s32.totalorder %s98, %s99
      %p110 = scmp.eq.s32.totalorder %s22, 0
      %p111 = por %p109, %p110
      %p112 = scmp.ne.s32.totalorder %s98, %s99
      %p113 = scmp.eq.s32.totalorder %s23, 1
      %p114 = por %p112, %p113
      %p116 = scmp.ne.s32.totalorder %s99, %s115
      %p117 = scmp.eq.s32.totalorder %s23, 0
      %p118 = por %p116, %p117
      %p119 = scmp.le.s32.totalorder 1, %s17
      %p120 = scmp.lt.s32.totalorder %s17, 3
      %p121 = pnand %p119, %p120
      %p122 = pneg %p121
      // Predicated region
      $region9: #{tpu_custom_call.1} parent=5 // pred_check
        _
      $region10: #{tpu_custom_call.1} parent=5 // pred_check_branch
        %124 = sbr.rel (%p121) target = $region12
      $region11: #{tpu_custom_call.1} parent=5 // pred_region
        %s125 = ssub.s32 %s17, 1
      $region12: #{tpu_custom_call.1} parent=5 // pred_fallthru
        _
      %p126 = scmp.lt.s32.totalorder %s17, 2
      // Predicated region
      $region13: #{tpu_custom_call.1} parent=5 // pred_check
        %p127 = pneg %p126
      $region14: #{tpu_custom_call.1} parent=5 // pred_check_branch
        %129 = sbr.rel (%p127) target = $region16
      $region15: #{tpu_custom_call.1} parent=5 // pred_region
        // Predicated region
        $region17: #{tpu_custom_call.1} parent=15 // pred_check
          %p130 = pneg %p51
        $region18: #{tpu_custom_call.1} parent=15 // pred_check_branch
          %132 = sbr.rel (%p130) target = $region20
        $region19: #{tpu_custom_call.1} parent=15 // pred_region
          #allocation10 [shape = 'u32[6]{0}', space=smem, size = 0x18, scoped, tag = 'DMA stride descriptor']
          %s133 = sand.u32 %s41, 1
          %s134 = scalar_lea.sflag [#allocation4], %s133
          %s135 = sand.u32 %s41, 1
          %s136 = smul.addr %s135, 64
          %s137 = scalar_lea.vmem [#allocation3], %s136
          %s138 = sadd.s32 %s24, %s25
          %s139 = smul.u32 4, %s138
          %s141 = ssub.s32 1024, 1024
          %142 = vsyncadd %s134, %s141
          %s143 = smul.addr %s139, 128
          %s144 = scalar_lea.hbm %s0, %s143
          %s146 = sshll.u32 1, 14
          %s147 = sxor.u32 4294967295, %s146
          %s149 = sld [smem:[#allocation0]]
          %s150 = sadd.s32 2, %s149
          %s152 = sshll.u32 7, 26
          %s153 = sxor.u32 4294967295, %s152
          %s154 = sand.u32 0, %s153
          %s155 = sshll.u32 %s150, 26
          %s156 = sor.u32 %s154, %s155
          %s157 = sshll.u32 %s137, 4
          %s158 = int_to_ptr.vmem [resolvable:$true] %s157
          %164 = sst [smem:[#allocation10]] 1024
          %s165 = scalar_lea.smem [#allocation10], 1
          %166 = sst [smem:[%s165]] 512
          %s167 = scalar_lea.smem [#allocation10], 2
          %168 = sst [smem:[%s167]] 4
          %s169 = scalar_lea.smem [#allocation10], 3
          %170 = sst [smem:[%s169]] 128
          %s171 = scalar_lea.smem [#allocation10], 4
          %172 = sst [smem:[%s171]] 128
          %s173 = scalar_lea.smem [#allocation10], 5
          %174 = sst [smem:[%s173]] 8
          %176 = dma.general %s144, 1024, %s158, %s134, [#allocation9], [#allocation10], %s156, 0
        $region20: #{tpu_custom_call.1} parent=15 // pred_fallthru
          _
        // Predicated region
        $region21: #{tpu_custom_call.1} parent=15 // pred_check
          %p177 = pneg %p79
        $region22: #{tpu_custom_call.1} parent=15 // pred_check_branch
          %179 = sbr.rel (%p177) target = $region24
        $region23: #{tpu_custom_call.1} parent=15 // pred_region
          #allocation12 [shape = 'u32[6]{0}', space=smem, size = 0x18, scoped, tag = 'DMA stride descriptor']
          %s180 = sand.u32 %s69, 1
          %s181 = scalar_lea.sflag [#allocation7], %s180
          %s182 = sand.u32 %s69, 1
          %s183 = smul.addr %s182, 64
          %s184 = scalar_lea.vmem [#allocation6], %s183
          %s185 = sadd.s32 %s24, %s25
          %s186 = smul.u32 4, %s185
          %s188 = ssub.s32 1024, 1024
          %189 = vsyncadd %s181, %s188
          %s190 = smul.addr %s186, 128
          %s191 = scalar_lea.hbm %s1, %s190
          %s193 = sshll.u32 1, 14
          %s194 = sxor.u32 4294967295, %s193
          %s196 = sld [smem:[#allocation0]]
          %s197 = sadd.s32 2, %s196
          %s199 = sshll.u32 7, 26
          %s200 = sxor.u32 4294967295, %s199
          %s201 = sand.u32 0, %s200
          %s202 = sshll.u32 %s197, 26
          %s203 = sor.u32 %s201, %s202
          %s204 = sshll.u32 %s184, 4
          %s205 = int_to_ptr.vmem [resolvable:$true] %s204
          %211 = sst [smem:[#allocation12]] 1024
          %s212 = scalar_lea.smem [#allocation12], 1
          %213 = sst [smem:[%s212]] 512
          %s214 = scalar_lea.smem [#allocation12], 2
          %215 = sst [smem:[%s214]] 4
          %s216 = scalar_lea.smem [#allocation12], 3
          %217 = sst [smem:[%s216]] 128
          %s218 = scalar_lea.smem [#allocation12], 4
          %219 = sst [smem:[%s218]] 128
          %s220 = scalar_lea.smem [#allocation12], 5
          %221 = sst [smem:[%s220]] 8
          %223 = dma.general %s191, 1024, %s205, %s181, [#allocation11], [#allocation12], %s203, 0
        $region24: #{tpu_custom_call.1} parent=15 // pred_fallthru
          _
      $region16: #{tpu_custom_call.1} parent=5 // pred_fallthru
        _
      %p224 = scmp.le.s32.totalorder 1, %s17
      %p225 = scmp.lt.s32.totalorder %s17, 3
      %p226 = pnand %p224, %p225
      %p227 = pneg %p226
      // Predicated region
      $region25: #{tpu_custom_call.1} parent=5 // pred_check
        _
      $region26: #{tpu_custom_call.1} parent=5 // pred_check_branch
        %229 = sbr.rel (%p226) target = $region28
      $region27: #{tpu_custom_call.1} parent=5 // pred_region
        %s230 = ssub.s32 %s17, 1
        %s231 = sand.u32 %s44, 1
        %s232 = scalar_lea.sflag [#allocation4], %s231
        %s233 = sand.u32 %s44, 1
        %s234 = smul.addr %s233, 64
        %s235 = scalar_lea.vmem [#allocation3], %s234
        // Predicated region
        $region29: #{tpu_custom_call.1} parent=27 // pred_check
          %p236 = pneg %p57
        $region30: #{tpu_custom_call.1} parent=27 // pred_check_branch
          %238 = sbr.rel (%p236) target = $region32
        $region31: #{tpu_custom_call.1} parent=27 // pred_region
          %239 = dma.done %s232, 1024
        $region32: #{tpu_custom_call.1} parent=27 // pred_fallthru
          _
        %s240 = sand.u32 %s72, 1
        %s241 = scalar_lea.sflag [#allocation7], %s240
        %s242 = sand.u32 %s72, 1
        %s243 = smul.addr %s242, 64
        %s244 = scalar_lea.vmem [#allocation6], %s243
        // Predicated region
        $region33: #{tpu_custom_call.1} parent=27 // pred_check
          %p245 = pneg %p85
        $region34: #{tpu_custom_call.1} parent=27 // pred_check_branch
          %247 = sbr.rel (%p245) target = $region36
        $region35: #{tpu_custom_call.1} parent=27 // pred_region
          %248 = dma.done %s241, 1024
        $region36: #{tpu_custom_call.1} parent=27 // pred_fallthru
          _
        %s249 = sand.u32 %s44, 1
        %s250 = scalar_lea.sflag [#allocation4], %s249
        %s251 = sand.u32 %s44, 1
        %s252 = smul.addr %s251, 64
        %s253 = scalar_lea.vmem [#allocation3], %s252
        %p254 = pneg %p57
        %p255 = pneg %p54
        %s256 = sand.u32 %s72, 1
        %s257 = scalar_lea.sflag [#allocation7], %s256
        %s258 = sand.u32 %s72, 1
        %s259 = smul.addr %s258, 64
        %s260 = scalar_lea.vmem [#allocation6], %s259
        %p261 = pneg %p85
        %p262 = pneg %p82
        %p263 = pneg %p111
        %p264 = pneg %p108
        %s265 = sand.u32 %s98, 1
        %s266 = scalar_lea.sflag [#allocation5], %s265
        %s267 = sand.u32 %s98, 1
        %s268 = smul.addr %s267, 80
        %s269 = scalar_lea.vmem [#allocation8], %s268
        %s270 = sadd.s32 %s26, %s27
        %s271 = smul.u32 4, %s270
        %s272 = sadd.s32 %s26, %s27
        %s273 = smul.u32 4, %s272
        %s274 = smul.u32 5, %s26
        %p275 = scmp.eq.s32.totalorder %s27, 0
        // Predicated region
        $region37: #{tpu_custom_call.1} parent=27 // pred_check
          %p276 = pneg %p275
        $region38: #{tpu_custom_call.1} parent=27 // pred_check_branch
          %278 = sbr.rel (%p276) target = $region40
        $region39: #{tpu_custom_call.1} parent=27 // pred_region
          %279 = vst [vmem:[#allocation2] sm:$0xff] 0.0
          %280 = vst [vmem:[#allocation2 + $0x8] sm:$0xff] 0.0
          %281 = vst [vmem:[#allocation2 + $0x10] sm:$0xff] 0.0
          %282 = vst [vmem:[#allocation2 + $0x18] sm:$0xff] 0.0
          %283 = vst [vmem:[#allocation2 + $0x20] sm:$0xff] 0.0
          %284 = vst [vmem:[#allocation2 + $0x28] sm:$0xff] 0.0
          %285 = vst [vmem:[#allocation2 + $0x30] sm:$0xff] 0.0
          %286 = vst [vmem:[#allocation2 + $0x38] sm:$0xff] 0.0
          %287 = vst [vmem:[#allocation2 + $0x40] sm:$0xff] 0.0
          %288 = vst [vmem:[#allocation2 + $0x48] sm:$0xff] 0.0
        $region40: #{tpu_custom_call.1} parent=27 // pred_fallthru
          _
        %v289 = vld [vmem:[%s235] sm:$0xff]
        %v290 = vld [vmem:[%s235 + $0x8] sm:$0xff]
        %v291 = vld [vmem:[%s235 + $0x10] sm:$0xff]
        %v292 = vld [vmem:[%s235 + $0x18] sm:$0xff]
        %v293 = vld [vmem:[%s235 + $0x20] sm:$0xff]
        %v294 = vld [vmem:[%s235 + $0x28] sm:$0xff]
        %v295 = vld [vmem:[%s235 + $0x30] sm:$0xff]
        %v296 = vld [vmem:[%s235 + $0x38] sm:$0xff]
        %v297 = vld [vmem:[%s244] sm:$0xff]
        %v298 = vld [vmem:[%s244 + $0x8] sm:$0xff]
        %v299 = vld [vmem:[%s244 + $0x10] sm:$0xff]
        %v300 = vld [vmem:[%s244 + $0x18] sm:$0xff]
        %v301 = vld [vmem:[%s244 + $0x20] sm:$0xff]
        %v302 = vld [vmem:[%s244 + $0x28] sm:$0xff]
        %v303 = vld [vmem:[%s244 + $0x30] sm:$0xff]
        %v304 = vld [vmem:[%s244 + $0x38] sm:$0xff]
        %v305 = vld [vmem:[#allocation2] sm:$0xff]
        %v306 = vld [vmem:[#allocation2 + $0x8] sm:$0xff]
        %v307 = vmul.f32 %v289, %v297
        %v308 = vmul.f32 %v290, %v298
        %v309 = vmul.f32 %v291, %v299
        %v310 = vmul.f32 %v292, %v300
        %v311 = vmul.f32 %v293, %v301
        %v312 = vmul.f32 %v294, %v302
        %v313 = vmul.f32 %v295, %v303
        %v314 = vmul.f32 %v296, %v304
        %v315 = vadd.f32 %v307, %v308
        %v316 = vadd.f32 %v315, %v309
        %v317 = vadd.f32 %v316, %v310
        %v318 = vadd.f32 %v311, %v312
        %v319 = vadd.f32 %v318, %v313
        %v320 = vadd.f32 %v319, %v314
        %v321 = vadd.f32 %v305, %v317
        %v322 = vadd.f32 %v306, %v320
        %323 = vst [vmem:[#allocation2] sm:$0xff] %v321
        %324 = vst [vmem:[#allocation2 + $0x8] sm:$0xff] %v322
        %s325 = scalar_lea.vmem [#allocation2], 16
        %v326 = vld [vmem:[%s325] sm:$0xff]
        %v327 = vld [vmem:[%s325 + $0x8] sm:$0xff]
        %v328 = vmul.f32 %v289, %v289
        %v329 = vmul.f32 %v290, %v290
        %v330 = vmul.f32 %v291, %v291
        %v331 = vmul.f32 %v292, %v292
        %v332 = vmul.f32 %v293, %v293
        %v333 = vmul.f32 %v294, %v294
        %v334 = vmul.f32 %v295, %v295
        %v335 = vmul.f32 %v296, %v296
        %v336 = vadd.f32 %v328, %v329
        %v337 = vadd.f32 %v336, %v330
        %v338 = vadd.f32 %v337, %v331
        %v339 = vadd.f32 %v332, %v333
        %v340 = vadd.f32 %v339, %v334
        %v341 = vadd.f32 %v340, %v335
        %v342 = vadd.f32 %v326, %v338
        %v343 = vadd.f32 %v327, %v341
        %344 = vst [vmem:[%s325] sm:$0xff] %v342
        %345 = vst [vmem:[%s325 + $0x8] sm:$0xff] %v343
        %v346 = vsub.f32 %v289, %v297
        %v347 = vsub.f32 %v290, %v298
        %v348 = vsub.f32 %v291, %v299
        %v349 = vsub.f32 %v292, %v300
        %v350 = vsub.f32 %v293, %v301
        %v351 = vsub.f32 %v294, %v302
        %v352 = vsub.f32 %v295, %v303
        %v353 = vsub.f32 %v296, %v304
        %v354 = vand.u32 2147483647, %v346
        %v355 = vand.u32 2147483647, %v347
        %v356 = vand.u32 2147483647, %v348
        %v357 = vand.u32 2147483647, %v349
        %v358 = vand.u32 2147483647, %v350
        %v359 = vand.u32 2147483647, %v351
        %v360 = vand.u32 2147483647, %v352
        %v361 = vand.u32 2147483647, %v353
        %v362 = vsub.f32 1.0, %v354
        %v363 = vsub.f32 1.0, %v355
        %v364 = vsub.f32 1.0, %v356
        %v365 = vsub.f32 1.0, %v357
        %v366 = vsub.f32 1.0, %v358
        %v367 = vsub.f32 1.0, %v359
        %v368 = vsub.f32 1.0, %v360
        %v369 = vsub.f32 1.0, %v361
        %v370 = vlog2.pop %v362
        %v371 = vmul.f32 %v370, 0.6931472
        %v372 = vlog2.pop %v363
        %v373 = vmul.f32 %v372, 0.6931472
        %v374 = vlog2.pop %v364
        %v375 = vmul.f32 %v374, 0.6931472
        %v376 = vlog2.pop %v365
        %v377 = vmul.f32 %v376, 0.6931472
        %v378 = vlog2.pop %v366
        %v379 = vmul.f32 %v378, 0.6931472
        %v380 = vlog2.pop %v367
        %v381 = vmul.f32 %v380, 0.6931472
        %v382 = vlog2.pop %v368
        %v383 = vmul.f32 %v382, 0.6931472
        %v384 = vlog2.pop %v369
        %v385 = vmul.f32 %v384, 0.6931472
        %v386 = vsub.f32 0.0, %v371
        %v387 = vsub.f32 0.0, %v373
        %v388 = vsub.f32 0.0, %v375
        %v389 = vsub.f32 0.0, %v377
        %v390 = vsub.f32 0.0, %v379
        %v391 = vsub.f32 0.0, %v381
        %v392 = vsub.f32 0.0, %v383
        %v393 = vsub.f32 0.0, %v385
        %v394 = vmin.f32 %v386, 100.0
        %v395 = vmin.f32 %v387, 100.0
        %v396 = vmin.f32 %v388, 100.0
        %v397 = vmin.f32 %v389, 100.0
        %v398 = vmin.f32 %v390, 100.0
        %v399 = vmin.f32 %v391, 100.0
        %v400 = vmin.f32 %v392, 100.0
        %v401 = vmin.f32 %v393, 100.0
        %s402 = scalar_lea.vmem [#allocation2], 32
        %v403 = vld [vmem:[%s402] sm:$0xff]
        %v404 = vld [vmem:[%s402 + $0x8] sm:$0xff]
        %v405 = vadd.f32 %v297, %v298
        %v406 = vadd.f32 %v405, %v299
        %v407 = vadd.f32 %v406, %v300
        %v408 = vadd.f32 %v301, %v302
        %v409 = vadd.f32 %v408, %v303
        %v410 = vadd.f32 %v409, %v304
        %v411 = vadd.f32 %v403, %v407
        %v412 = vadd.f32 %v404, %v410
        %413 = vst [vmem:[%s402] sm:$0xff] %v411
        %414 = vst [vmem:[%s402 + $0x8] sm:$0xff] %v412
        %s415 = scalar_lea.vmem [#allocation2], 48
        %v416 = vld [vmem:[%s415] sm:$0xff]
        %v417 = vld [vmem:[%s415 + $0x8] sm:$0xff]
        %v418 = vmul.f32 %v297, %v394
        %v419 = vmul.f32 %v298, %v395
        %v420 = vmul.f32 %v299, %v396
        %v421 = vmul.f32 %v300, %v397
        %v422 = vmul.f32 %v301, %v398
        %v423 = vmul.f32 %v302, %v399
        %v424 = vmul.f32 %v303, %v400
        %v425 = vmul.f32 %v304, %v401
        %v426 = vadd.f32 %v418, %v419
        %v427 = vadd.f32 %v426, %v420
        %v428 = vadd.f32 %v427, %v421
        %v429 = vadd.f32 %v422, %v423
        %v430 = vadd.f32 %v429, %v424
        %v431 = vadd.f32 %v430, %v425
        %v432 = vadd.f32 %v416, %v428
        %v433 = vadd.f32 %v417, %v431
        %434 = vst [vmem:[%s415] sm:$0xff] %v432
        %435 = vst [vmem:[%s415 + $0x8] sm:$0xff] %v433
        %s436 = scalar_lea.vmem [#allocation2], 64
        %v437 = vld [vmem:[%s436] sm:$0xff]
        %v438 = vld [vmem:[%s436 + $0x8] sm:$0xff]
        %v439 = vadd.f32 %v394, %v395
        %v440 = vadd.f32 %v439, %v396
        %v441 = vadd.f32 %v440, %v397
        %v442 = vadd.f32 %v398, %v399
        %v443 = vadd.f32 %v442, %v400
        %v444 = vadd.f32 %v443, %v401
        %v445 = vadd.f32 %v437, %v441
        %v446 = vadd.f32 %v438, %v444
        %447 = vst [vmem:[%s436] sm:$0xff] %v445
        %448 = vst [vmem:[%s436 + $0x8] sm:$0xff] %v446
        // Predicated region
        $region41: #{tpu_custom_call.1} parent=27 // pred_check
          %p449 = pneg %p275
        $region42: #{tpu_custom_call.1} parent=27 // pred_check_branch
          %451 = sbr.rel (%p449) target = $region44
        $region43: #{tpu_custom_call.1} parent=27 // pred_region
          %v452 = vld [vmem:[#allocation2] sm:$0xff]
          %v453 = vld [vmem:[#allocation2 + $0x8] sm:$0xff]
          %v454 = vld [vmem:[#allocation2 + $0x10] sm:$0xff]
          %v455 = vld [vmem:[#allocation2 + $0x18] sm:$0xff]
          %v456 = vld [vmem:[#allocation2 + $0x20] sm:$0xff]
          %v457 = vld [vmem:[#allocation2 + $0x28] sm:$0xff]
          %v458 = vld [vmem:[#allocation2 + $0x30] sm:$0xff]
          %v459 = vld [vmem:[#allocation2 + $0x38] sm:$0xff]
          %v460 = vld [vmem:[#allocation2 + $0x40] sm:$0xff]
          %v461 = vld [vmem:[#allocation2 + $0x48] sm:$0xff]
          %462 = vst [vmem:[%s269] sm:$0xff] %v452
          %463 = vst [vmem:[%s269 + $0x8] sm:$0xff] %v453
          %464 = vst [vmem:[%s269 + $0x10] sm:$0xff] %v454
          %465 = vst [vmem:[%s269 + $0x18] sm:$0xff] %v455
          %466 = vst [vmem:[%s269 + $0x20] sm:$0xff] %v456
          %467 = vst [vmem:[%s269 + $0x28] sm:$0xff] %v457
          %468 = vst [vmem:[%s269 + $0x30] sm:$0xff] %v458
          %469 = vst [vmem:[%s269 + $0x38] sm:$0xff] %v459
          %470 = vst [vmem:[%s269 + $0x40] sm:$0xff] %v460
          %471 = vst [vmem:[%s269 + $0x48] sm:$0xff] %v461
        $region44: #{tpu_custom_call.1} parent=27 // pred_fallthru
          _
        %s472 = sand.u32 %s98, 1
        %s473 = scalar_lea.sflag [#allocation5], %s472
        %s474 = sand.u32 %s98, 1
        %s475 = smul.addr %s474, 80
        %s476 = scalar_lea.vmem [#allocation8], %s475
        // Predicated region
        $region45: #{tpu_custom_call.1} parent=27 // pred_check
          %p477 = pneg %p108
        $region46: #{tpu_custom_call.1} parent=27 // pred_check_branch
          %479 = sbr.rel (%p477) target = $region48
        $region47: #{tpu_custom_call.1} parent=27 // pred_region
          %s480 = smul.u32 5, %s26
          %s482 = ssub.s32 1280, 1280
          %483 = vsyncadd %s473, %s482
          %s484 = smul.addr %s480, 2
          %s485 = smul.addr %s484, 128
          %s486 = scalar_lea.hbm %s2, %s485
          %s487 = sshll.u32 %s476, 4
          %s488 = int_to_ptr.vmem [resolvable:$true] %s487
          %493 = dma.vmem_to_hbm [thread:$0]  %s488, 1280, %s486, %s473, 128, 128, 8
        $region48: #{tpu_custom_call.1} parent=27 // pred_fallthru
          _
      $region28: #{tpu_custom_call.1} parent=5 // pred_fallthru
        _
      %p494 = scmp.le.s32.totalorder 2, %s17
      // Predicated region
      $region49: #{tpu_custom_call.1} parent=5 // pred_check
        %p495 = pneg %p494
      $region50: #{tpu_custom_call.1} parent=5 // pred_check_branch
        %497 = sbr.rel (%p495) target = $region52
      $region51: #{tpu_custom_call.1} parent=5 // pred_region
        %s498 = ssub.s32 %s17, 2
        // Predicated region
        $region53: #{tpu_custom_call.1} parent=51 // pred_check
          %p499 = pneg %p114
        $region54: #{tpu_custom_call.1} parent=51 // pred_check_branch
          %501 = sbr.rel (%p499) target = $region56
        $region55: #{tpu_custom_call.1} parent=51 // pred_region
          %s502 = sand.u32 %s99, 1
          %s503 = scalar_lea.sflag [#allocation5], %s502
          %s504 = sand.u32 %s99, 1
          %s505 = smul.addr %s504, 80
          %s506 = scalar_lea.vmem [#allocation8], %s505
          %507 = dma.done %s503, 1280
        $region56: #{tpu_custom_call.1} parent=51 // pred_fallthru
          _
      $region52: #{tpu_custom_call.1} parent=5 // pred_fallthru
        _
    $region6: #{tpu_custom_call.1} parent=1 // loop_footer
      %s21 = sadd.s32 1, %s17
    $region7: #{tpu_custom_call.1} parent=1 // loop_footer_branch
      %16 = sbr.rel target = $region3
    $region8: #{tpu_custom_call.1} parent=1 // loop_exit
      _
    %508 = vsyncpa [#allocation4], 1
    %s509 = scalar_lea.sflag [#allocation4], 1
    %510 = vsyncpa %s509, 1
    %511 = vsyncpa [#allocation7], 1
    %s512 = scalar_lea.sflag [#allocation7], 1
    %513 = vsyncpa %s512, 1
    %514 = vsyncpa [#allocation5], 1
    %s515 = scalar_lea.sflag [#allocation5], 1
    %516 = vsyncpa %s515, 1

</llo_original>
